<compile_context>
chip_gen: v6e
topology: v6e:2x2x1
jax: 0.10.0
libtpu: 0.0.40
codegen_flags: <defaults>
</compile_context>

<pallas_src>
import jax
import jax.numpy as jnp
from jax import lax
from jax.experimental import pallas as pl
from jax.experimental.pallas import tpu as pltpu


def _round_up(x, m):
    return (x + m - 1) // m * m


def _cdist_kernel(xi_ref, xj_ref, sqi_ref, sqj_ref, o_ref):
    # xi_ref : (T, D)  row tile of embeddings
    # xj_ref : (T, D)  column tile of embeddings (row-major, never transposed)
    # sqi_ref: (T, 1)  precomputed ||x_i||^2 for the row tile
    # sqj_ref: (1, T)  precomputed ||x_j||^2 for the column tile
    # o_ref  : (T, T)  output distance tile
    cross = lax.dot_general(
        xi_ref[...], xj_ref[...],
        dimension_numbers=(((1,), (1,)), ((), ())),   # contract D with D (implicit x_j^T)
        preferred_element_type=jnp.float32,
    )                                                  # (T, T) on the MXU

    d2 = sqi_ref[...] + sqj_ref[...] - 2.0 * cross
    d2 = jnp.maximum(d2, 0.0)                          # guard fp cancellation
    d = jnp.sqrt(d2)

    # cdist(x, x) has an exactly-zero diagonal; the mm-trick otherwise leaves
    # ~sqrt(eps * ||x||^2) noise there.  Cheap VPU filler under the MXU.
    tm, tn = o_ref.shape
    row = pl.program_id(0) * tm + lax.broadcasted_iota(jnp.int32, (tm, tn), 0)
    col = pl.program_id(1) * tn + lax.broadcasted_iota(jnp.int32, (tm, tn), 1)
    d = jnp.where(row == col, 0.0, d)

    o_ref[...] = d.astype(o_ref.dtype)


def euclidean_head(embeddings, *, tile=256):
    """Pallas equivalent of EuclideanHead.forward: cdist(x, x, p=2).unsqueeze(0)."""
    # TODO(synk): only p=2 (the module default) is implemented; a general Lp
    # Minkowski cdist has no MXU formulation.
    N, D = embeddings.shape

    # Lane-dense square tiles (multiple of 128); shrink for tiny inputs.
    t = min(tile, _round_up(N, 128))
    n_pad = _round_up(N, t)

    x = embeddings
    if n_pad != N:
        x = jnp.pad(x, ((0, n_pad - N), (0, 0)))

    # Squared norms: computed once here, streamed as (T,1)/(1,T) blocks so the
    # kernel never recomputes them and never does a cross-lane transpose.
    xf = x.astype(jnp.float32)
    sq = jnp.sum(xf * xf, axis=-1)
    sq_col = sq[:, None]          # (n_pad, 1) — row norms
    sq_row = sq[None, :]          # (1, n_pad) — column norms

    grid = (n_pad // t, n_pad // t)

    dist = pl.pallas_call(
        _cdist_kernel,
        out_shape=jax.ShapeDtypeStruct((n_pad, n_pad), jnp.float32),
        grid_spec=pltpu.PrefetchScalarGridSpec(
            num_scalar_prefetch=0,
            grid=grid,
            in_specs=[
                pl.BlockSpec((t, D), lambda i, j: (i, 0)),   # xi row tile
                pl.BlockSpec((t, D), lambda i, j: (j, 0)),   # xj column tile
                pl.BlockSpec((t, 1), lambda i, j: (i, 0)),   # ||x_i||^2
                pl.BlockSpec((1, t), lambda i, j: (0, j)),   # ||x_j||^2
            ],
            out_specs=pl.BlockSpec((t, t), lambda i, j: (i, j)),
        ),
        compiler_params=pltpu.CompilerParams(
            dimension_semantics=("parallel", "parallel")),
    )(x, x, sq_col, sq_row)

    # slice away the padding; unsqueeze(0) — glue outside the kernel
    return dist[:N, :N][None, :, :]


def _reference(embeddings):
    x = embeddings.astype(jnp.float32)
    diff = x[:, None, :] - x[None, :, :]
    return jnp.sqrt(jnp.sum(diff * diff, axis=-1))[None]


if __name__ == "__main__":
    key = jax.random.PRNGKey(0)
    N, D = 16, 32                      # small: 16 points, 32-dim embeddings
    embeddings = jax.random.normal(key, (N, D), dtype=jnp.float32)

    out = euclidean_head(embeddings)
    out = jax.block_until_ready(out)

    ref = _reference(embeddings)
    assert out.shape == (1, N, N), out.shape

    # The a^2+b^2-2ab formulation (same trick as torch.cdist's mm compute mode)
    # carries small cancellation noise near zero distances; the diagonal is
    # forced to exact 0 in-kernel, off-diagonal error is ~1e-6 at this scale.
    err = float(jnp.max(jnp.abs(out - ref)))
    assert err < 1e-3, f"max err {err}"

    print("KERNEL_OK")
</pallas_src>

<mosaic_0001>
module attributes {stable_mosaic.version = 11 : i64} {
  func.func @_cdist_kernel(%arg0: i32, %arg1: i32, %arg2: memref<128x32xf32, #tpu.memory_space<vmem>>, %arg3: memref<128x32xf32, #tpu.memory_space<vmem>>, %arg4: memref<128x1xf32, #tpu.memory_space<vmem>>, %arg5: memref<1x128xf32, #tpu.memory_space<vmem>>, %arg6: memref<128x128xf32, #tpu.memory_space<vmem>>) attributes {dimension_semantics = [#tpu.dimension_semantics<parallel>, #tpu.dimension_semantics<parallel>], iteration_bounds = array<i64: 1, 1>, scalar_prefetch = 0 : i64, scratch_operands = 0 : i64, tpu.core_type = #tpu.core_type<tc>, window_params = [{transform_indices = @transform_0, window_bounds = array<i64: 128, 32>}, {transform_indices = @transform_1, window_bounds = array<i64: 128, 32>}, {transform_indices = @transform_2, window_bounds = array<i64: 128, 1>}, {transform_indices = @transform_3, window_bounds = array<i64: 1, 128>}, {transform_indices = @transform_4, window_bounds = array<i64: 128, 128>}]} {
    %c0 = arith.constant 0 : index
    %c0_0 = arith.constant 0 : index
    %0 = vector.load %arg2[%c0, %c0_0] : memref<128x32xf32, #tpu.memory_space<vmem>>, vector<128x32xf32>
    %c0_1 = arith.constant 0 : index
    %c0_2 = arith.constant 0 : index
    %1 = vector.load %arg3[%c0_1, %c0_2] : memref<128x32xf32, #tpu.memory_space<vmem>>, vector<128x32xf32>
    %cst = arith.constant dense<0.000000e+00> : vector<128x128xf32>
    %2 = tpu.matmul %0, %1, %cst {dimension_numbers = #tpu.dot_dimension_numbers<[1], [1], [0], [0], [0, 0, 1, 0], [], []>} : vector<128x32xf32>, vector<128x32xf32>, vector<128x128xf32> -> vector<128x128xf32>
    %c0_3 = arith.constant 0 : index
    %c0_4 = arith.constant 0 : index
    %3 = vector.load %arg4[%c0_3, %c0_4] : memref<128x1xf32, #tpu.memory_space<vmem>>, vector<128x1xf32>
    %c0_5 = arith.constant 0 : index
    %c0_6 = arith.constant 0 : index
    %4 = vector.load %arg5[%c0_5, %c0_6] : memref<1x128xf32, #tpu.memory_space<vmem>>, vector<1x128xf32>
    %5 = vector.broadcast %3 : vector<128x1xf32> to vector<128x128xf32>
    %6 = vector.broadcast %4 : vector<1x128xf32> to vector<128x128xf32>
    %7 = arith.addf %5, %6 : vector<128x128xf32>
    %cst_7 = arith.constant 2.000000e+00 : f32
    %8 = vector.broadcast %cst_7 : f32 to vector<128x128xf32>
    %9 = arith.mulf %8, %2 : vector<128x128xf32>
    %10 = arith.subf %7, %9 : vector<128x128xf32>
    %cst_8 = arith.constant 0.000000e+00 : f32
    %11 = vector.broadcast %cst_8 : f32 to vector<128x128xf32>
    %12 = arith.maximumf %10, %11 : vector<128x128xf32>
    %13 = math.sqrt %12 : vector<128x128xf32>
    %c128_i32 = arith.constant 128 : i32
    %14 = arith.muli %arg0, %c128_i32 : i32
    %15 = tpu.iota {dimensions = array<i32: 0>} : vector<128x128xi32>
    %16 = vector.broadcast %14 : i32 to vector<128x128xi32>
    %17 = arith.addi %16, %15 : vector<128x128xi32>
    %c128_i32_9 = arith.constant 128 : i32
    %18 = arith.muli %arg1, %c128_i32_9 : i32
    %19 = tpu.iota {dimensions = array<i32: 1>} : vector<128x128xi32>
    %20 = vector.broadcast %18 : i32 to vector<128x128xi32>
    %21 = arith.addi %20, %19 : vector<128x128xi32>
    %22 = arith.cmpi eq, %17, %21 : vector<128x128xi32>
    %cst_10 = arith.constant 0.000000e+00 : f32
    %23 = vector.broadcast %cst_10 : f32 to vector<128x128xf32>
    %24 = arith.select %22, %23, %13 : vector<128x128xi1>, vector<128x128xf32>
    %c0_11 = arith.constant 0 : index
    %c0_12 = arith.constant 0 : index
    %25 = vector.load %arg6[%c0_11, %c0_12] : memref<128x128xf32, #tpu.memory_space<vmem>>, vector<128x128xf32>
    tpu.vector_store %arg6[%c0_11, %c0_12], %24 {strides = array<i32>} : memref<128x128xf32, #tpu.memory_space<vmem>>, vector<128x128xf32>,
    return
  }
  func.func @transform_0(%arg0: i32, %arg1: i32) -> (i32, i32) {
    %c0_i32 = arith.constant 0 : i32
    %c0_i32_0 = arith.constant 0 : i32
    return %arg0, %c0_i32 : i32, i32
  }
  func.func @transform_1(%arg0: i32, %arg1: i32) -> (i32, i32) {
    %c0_i32 = arith.constant 0 : i32
    %c0_i32_0 = arith.constant 0 : i32
    return %arg1, %c0_i32 : i32, i32
  }
  func.func @transform_2(%arg0: i32, %arg1: i32) -> (i32, i32) {
    %c0_i32 = arith.constant 0 : i32
    %c0_i32_0 = arith.constant 0 : i32
    return %arg0, %c0_i32 : i32, i32
  }
  func.func @transform_3(%arg0: i32, %arg1: i32) -> (i32, i32) {
    %c0_i32 = arith.constant 0 : i32
    %c0_i32_0 = arith.constant 0 : i32
    return %c0_i32, %arg1 : i32, i32
  }
  func.func @transform_4(%arg0: i32, %arg1: i32) -> (i32, i32) {
    %c0_i32 = arith.constant 0 : i32
    return %arg0, %arg1 : i32, i32
  }
}

</mosaic_0001>

<llo_original>
// kernel: tpu_custom_call.1
$region0: #{tpu_custom_call.1}
  #allocation0 [shape = 'u32[]', space=smem, size = 0x4, offset = 0x4, fixed_abs, tag = 'smem constant byte address 0x4 - core index']
  #allocation1 [shape = 'u32[144,128]{1,0:T(1,128)}', space=vmem, size = 0x12000, scoped, tag = 'internal scratch']
  %s0 = inlined_call_operand.vmem [shape: f32[128,32], index: 0, kind: input, shape index: {}]
  %s1 = inlined_call_operand.vmem [shape: f32[128,32], index: 1, kind: input, shape index: {}]
  %s2 = inlined_call_operand.vmem [shape: f32[128,1], index: 2, kind: input, shape index: {}]
  %s3 = inlined_call_operand.vmem [shape: f32[1,128], index: 3, kind: input, shape index: {}]
  %s4 = inlined_call_operand.hbm [shape: f32[128,128], index: 4, kind: output, shape index: {}]
  %s5 = sld [smem:[#allocation0]]
  $region26: #{tpu_custom_call.1} parent=0
    _
  %s7 = ssub.s32 1, %s5
  %s8 = scalar_select 0, %s7, %s5
  $region1: #{tpu_custom_call.1} parent=0
    #allocation2 [shape = 'u8[65536]{0}', space=vmem, size = 0x10000, scoped, tag = 'output window, operand 0, single buffered']
    #allocation3 [shape = 's32[1]{0}', space=sflag, size = 0x4, scoped, tag = 'scoped memory for tpu_custom_call.1']
    %9 = vsyncpa [#allocation3], 0
    // Predicated region
    $region2: #{tpu_custom_call.1} parent=1 // pred_check
      _
    $region3: #{tpu_custom_call.1} parent=1 // pred_check_branch
      %11 = sbr.rel (0) target = $region5
    $region4: #{tpu_custom_call.1} parent=1 // pred_region
      _
    $region5: #{tpu_custom_call.1} parent=1 // pred_fallthru
      _
    // Predicated region
    $region6: #{tpu_custom_call.1} parent=1 // pred_check
      _
    $region7: #{tpu_custom_call.1} parent=1 // pred_check_branch
      %13 = sbr.rel (0) target = $region9
    $region8: #{tpu_custom_call.1} parent=1 // pred_region
      _
    $region9: #{tpu_custom_call.1} parent=1 // pred_fallthru
      _
    // Predicated region
    $region10: #{tpu_custom_call.1} parent=1 // pred_check
      _
    $region11: #{tpu_custom_call.1} parent=1 // pred_check_branch
      %15 = sbr.rel (0) target = $region13
    $region12: #{tpu_custom_call.1} parent=1 // pred_region
      _
    $region13: #{tpu_custom_call.1} parent=1 // pred_fallthru
      _
    // Predicated region
    $region14: #{tpu_custom_call.1} parent=1 // pred_check
      _
    $region15: #{tpu_custom_call.1} parent=1 // pred_check_branch
      %17 = sbr.rel (0) target = $region17
    $region16: #{tpu_custom_call.1} parent=1 // pred_region
      _
    $region17: #{tpu_custom_call.1} parent=1 // pred_fallthru
      _
    %v18 = vld [vmem:[%s0] sm:$0xff]
    %v19 = vld [vmem:[%s0 + $0x8] sm:$0xff]
    %v20 = vld [vmem:[%s0 + $0x10] sm:$0xff]
    %v21 = vld [vmem:[%s0 + $0x18] sm:$0xff]
    %v22 = vld [vmem:[%s0 + $0x20] sm:$0xff]
    %v23 = vld [vmem:[%s0 + $0x28] sm:$0xff]
    %v24 = vld [vmem:[%s0 + $0x30] sm:$0xff]
    %v25 = vld [vmem:[%s0 + $0x38] sm:$0xff]
    %v26 = vld [vmem:[%s0 + $0x40] sm:$0xff]
    %v27 = vld [vmem:[%s0 + $0x48] sm:$0xff]
    %v28 = vld [vmem:[%s0 + $0x50] sm:$0xff]
    %v29 = vld [vmem:[%s0 + $0x58] sm:$0xff]
    %v30 = vld [vmem:[%s0 + $0x60] sm:$0xff]
    %v31 = vld [vmem:[%s0 + $0x68] sm:$0xff]
    %v32 = vld [vmem:[%s0 + $0x70] sm:$0xff]
    %v33 = vld [vmem:[%s0 + $0x78] sm:$0xff]
    %v34 = vld [vmem:[%s1] sm:$0xff]
    %v35 = vld [vmem:[%s1 + $0x8] sm:$0xff]
    %v36 = vld [vmem:[%s1 + $0x10] sm:$0xff]
    %v37 = vld [vmem:[%s1 + $0x18] sm:$0xff]
    %v38 = vld [vmem:[%s1 + $0x20] sm:$0xff]
    %v39 = vld [vmem:[%s1 + $0x28] sm:$0xff]
    %v40 = vld [vmem:[%s1 + $0x30] sm:$0xff]
    %v41 = vld [vmem:[%s1 + $0x38] sm:$0xff]
    %v42 = vld [vmem:[%s1 + $0x40] sm:$0xff]
    %v43 = vld [vmem:[%s1 + $0x48] sm:$0xff]
    %v44 = vld [vmem:[%s1 + $0x50] sm:$0xff]
    %v45 = vld [vmem:[%s1 + $0x58] sm:$0xff]
    %v46 = vld [vmem:[%s1 + $0x60] sm:$0xff]
    %v47 = vld [vmem:[%s1 + $0x68] sm:$0xff]
    %v48 = vld [vmem:[%s1 + $0x70] sm:$0xff]
    %v49 = vld [vmem:[%s1 + $0x78] sm:$0xff]
    %vm50 = vcmask 261120
    %v52 = vsel %vm50, %v18, 0
    %v55 = vsel %vm50, %v19, 0
    %v58 = vsel %vm50, %v20, 0
    %v61 = vsel %vm50, %v21, 0
    %v64 = vsel %vm50, %v22, 0
    %v67 = vsel %vm50, %v23, 0
    %v70 = vsel %vm50, %v24, 0
    %v73 = vsel %vm50, %v25, 0
    %v76 = vsel %vm50, %v26, 0
    %v79 = vsel %vm50, %v27, 0
    %v82 = vsel %vm50, %v28, 0
    %v85 = vsel %vm50, %v29, 0
    %v88 = vsel %vm50, %v30, 0
    %v91 = vsel %vm50, %v31, 0
    %v94 = vsel %vm50, %v32, 0
    %v97 = vsel %vm50, %v33, 0
    %v100 = vsel %vm50, %v34, 0
    %v103 = vsel %vm50, %v35, 0
    %v106 = vsel %vm50, %v36, 0
    %v109 = vsel %vm50, %v37, 0
    %v112 = vsel %vm50, %v38, 0
    %v115 = vsel %vm50, %v39, 0
    %v118 = vsel %vm50, %v40, 0
    %v121 = vsel %vm50, %v41, 0
    %v124 = vsel %vm50, %v42, 0
    %v127 = vsel %vm50, %v43, 0
    %v130 = vsel %vm50, %v44, 0
    %v133 = vsel %vm50, %v45, 0
    %v136 = vsel %vm50, %v46, 0
    %v139 = vsel %vm50, %v47, 0
    %v142 = vsel %vm50, %v48, 0
    %v145 = vsel %vm50, %v49, 0
    %147 = vmatprep.subr.mxu0 0.0
    %148 = vmatpush1.xpose.msra.mxu0 %v145
    %149 = vmatprep.subr.mxu0 0.0
    %150 = vmatpush1.xpose.msra.mxu0 %v142
    %151 = vmatprep.subr.mxu0 0.0
    %152 = vmatpush1.xpose.msra.mxu0 %v139
    %153 = vmatprep.subr.mxu0 0.0
    %154 = vmatpush1.xpose.msra.mxu0 %v136
    %155 = vmatprep.subr.mxu0 0.0
    %156 = vmatpush1.xpose.msra.mxu0 %v133
    %157 = vmatprep.subr.mxu0 0.0
    %158 = vmatpush1.xpose.msra.mxu0 %v130
    %159 = vmatprep.subr.mxu0 0.0
    %160 = vmatpush1.xpose.msra.mxu0 %v127
    %161 = vmatprep.subr.mxu0 0.0
    %162 = vmatpush1.xpose.msra.mxu0 %v124
    %163 = vmatprep.subr.mxu0 0.0
    %164 = vmatpush1.xpose.msra.mxu0 %v121
    %165 = vmatprep.subr.mxu0 0.0
    %166 = vmatpush1.xpose.msra.mxu0 %v118
    %167 = vmatprep.subr.mxu0 0.0
    %168 = vmatpush1.xpose.msra.mxu0 %v115
    %169 = vmatprep.subr.mxu0 0.0
    %170 = vmatpush1.xpose.msra.mxu0 %v112
    %171 = vmatprep.subr.mxu0 0.0
    %172 = vmatpush1.xpose.msra.mxu0 %v109
    %173 = vmatprep.subr.mxu0 0.0
    %174 = vmatpush1.xpose.msra.mxu0 %v106
    %175 = vmatprep.subr.mxu0 0.0
    %176 = vmatpush1.xpose.msra.mxu0 %v103
    %177 = vmatprep.subr.mxu0 0.0
    %178 = vmatpush1.xpose.msra.mxu0 %v100
    %179 = vmatprep.subr.mxu0 0.0
    %180 = vmatpush2.xpose.msra.mxu0 0.0
    %181 = vmatprep.subr.mxu0 0.0
    %182 = vmatpush2.xpose.msra.mxu0 0.0
    %183 = vmatprep.subr.mxu0 0.0
    %184 = vmatpush2.xpose.msra.mxu0 0.0
    %185 = vmatprep.subr.mxu0 0.0
    %186 = vmatpush2.xpose.msra.mxu0 0.0
    %187 = vmatprep.subr.mxu0 0.0
    %188 = vmatpush2.xpose.msra.mxu0 0.0
    %189 = vmatprep.subr.mxu0 0.0
    %190 = vmatpush2.xpose.msra.mxu0 0.0
    %191 = vmatprep.subr.mxu0 0.0
    %192 = vmatpush2.xpose.msra.mxu0 0.0
    %193 = vmatprep.subr.mxu0 0.0
    %194 = vmatpush2.xpose.msra.mxu0 0.0
    %195 = vmatprep.subr.mxu0 0.0
    %196 = vmatpush2.xpose.msra.mxu0 0.0
    %197 = vmatprep.subr.mxu0 0.0
    %198 = vmatpush2.xpose.msra.mxu0 0.0
    %199 = vmatprep.subr.mxu0 0.0
    %200 = vmatpush2.xpose.msra.mxu0 0.0
    %201 = vmatprep.subr.mxu0 0.0
    %202 = vmatpush2.xpose.msra.mxu0 0.0
    %203 = vmatprep.subr.mxu0 0.0
    %204 = vmatpush2.xpose.msra.mxu0 0.0
    %205 = vmatprep.subr.mxu0 0.0
    %206 = vmatpush2.xpose.msra.mxu0 0.0
    %207 = vmatprep.subr.mxu0 0.0
    %208 = vmatpush2.xpose.msra.mxu0 0.0
    %209 = vmatprep.subr.mxu0 0.0
    %210 = vmatpush2.xpose.msra.mxu0 0.0
    %211 = vmatprep.mubr.f32.mxu0 0.0
    %212 = vmatmul.mubr.f32.gmra.mxu0 %v52
    %v213 = vpop.f32.mrf.mxu0
    %v214 = vadd.f32 0.0, %v213
    %v215 = vpop.f32.mrf.mxu0
    %216 = vmatprep.mubr.f32.mxu0 0.0
    %217 = vmatmul.mubr.f32.gmra.mxu0 %v55
    %v218 = vpop.f32.mrf.mxu0
    %v219 = vadd.f32 0.0, %v218
    %v220 = vpop.f32.mrf.mxu0
    %221 = vmatprep.mubr.f32.mxu0 0.0
    %222 = vmatmul.mubr.f32.gmra.mxu0 %v58
    %v223 = vpop.f32.mrf.mxu0
    %v224 = vadd.f32 0.0, %v223
    %v225 = vpop.f32.mrf.mxu0
    %226 = vmatprep.mubr.f32.mxu0 0.0
    %227 = vmatmul.mubr.f32.gmra.mxu0 %v61
    %v228 = vpop.f32.mrf.mxu0
    %v229 = vadd.f32 0.0, %v228
    %v230 = vpop.f32.mrf.mxu0
    %231 = vmatprep.mubr.f32.mxu0 0.0
    %232 = vmatmul.mubr.f32.gmra.mxu0 %v64
    %v233 = vpop.f32.mrf.mxu0
    %v234 = vadd.f32 0.0, %v233
    %v235 = vpop.f32.mrf.mxu0
    %236 = vmatprep.mubr.f32.mxu0 0.0
    %237 = vmatmul.mubr.f32.gmra.mxu0 %v67
    %v238 = vpop.f32.mrf.mxu0
    %v239 = vadd.f32 0.0, %v238
    %v240 = vpop.f32.mrf.mxu0
    %241 = vmatprep.mubr.f32.mxu0 0.0
    %242 = vmatmul.mubr.f32.gmra.mxu0 %v70
    %v243 = vpop.f32.mrf.mxu0
    %v244 = vadd.f32 0.0, %v243
    %v245 = vpop.f32.mrf.mxu0
    %246 = vmatprep.mubr.f32.mxu0 0.0
    %247 = vmatmul.mubr.f32.gmra.mxu0 %v73
    %v248 = vpop.f32.mrf.mxu0
    %v249 = vadd.f32 0.0, %v248
    %v250 = vpop.f32.mrf.mxu0
    %251 = vmatprep.mubr.f32.mxu0 0.0
    %252 = vmatmul.mubr.f32.gmra.mxu0 %v76
    %v253 = vpop.f32.mrf.mxu0
    %v254 = vadd.f32 0.0, %v253
    %v255 = vpop.f32.mrf.mxu0
    %256 = vmatprep.mubr.f32.mxu0 0.0
    %257 = vmatmul.mubr.f32.gmra.mxu0 %v79
    %v258 = vpop.f32.mrf.mxu0
    %v259 = vadd.f32 0.0, %v258
    %v260 = vpop.f32.mrf.mxu0
    %261 = vmatprep.mubr.f32.mxu0 0.0
    %262 = vmatmul.mubr.f32.gmra.mxu0 %v82
    %v263 = vpop.f32.mrf.mxu0
    %v264 = vadd.f32 0.0, %v263
    %v265 = vpop.f32.mrf.mxu0
    %266 = vmatprep.mubr.f32.mxu0 0.0
    %267 = vmatmul.mubr.f32.gmra.mxu0 %v85
    %v268 = vpop.f32.mrf.mxu0
    %v269 = vadd.f32 0.0, %v268
    %v270 = vpop.f32.mrf.mxu0
    %271 = vmatprep.mubr.f32.mxu0 0.0
    %272 = vmatmul.mubr.f32.gmra.mxu0 %v88
    %v273 = vpop.f32.mrf.mxu0
    %v274 = vadd.f32 0.0, %v273
    %v275 = vpop.f32.mrf.mxu0
    %276 = vmatprep.mubr.f32.mxu0 0.0
    %277 = vmatmul.mubr.f32.gmra.mxu0 %v91
    %v278 = vpop.f32.mrf.mxu0
    %v279 = vadd.f32 0.0, %v278
    %v280 = vpop.f32.mrf.mxu0
    %281 = vmatprep.mubr.f32.mxu0 0.0
    %282 = vmatmul.mubr.f32.gmra.mxu0 %v94
    %v283 = vpop.f32.mrf.mxu0
    %v284 = vadd.f32 0.0, %v283
    %v285 = vpop.f32.mrf.mxu0
    %286 = vmatprep.mubr.f32.mxu0 0.0
    %287 = vmatmul.mubr.f32.gmra.mxu0 %v97
    %v288 = vpop.f32.mrf.mxu0
    %v289 = vadd.f32 0.0, %v288
    %v290 = vpop.f32.mrf.mxu0
    %291 = vdwg.mxu0
    %v292 = vld [vmem:[%s2] sm:$0xff]
    %v293 = vld [vmem:[%s2 + $0x8] sm:$0xff]
    %v294 = vld [vmem:[%s2 + $0x10] sm:$0xff]
    %v295 = vld [vmem:[%s2 + $0x18] sm:$0xff]
    %v296 = vld [vmem:[%s2 + $0x20] sm:$0xff]
    %v297 = vld [vmem:[%s2 + $0x28] sm:$0xff]
    %v298 = vld [vmem:[%s2 + $0x30] sm:$0xff]
    %v299 = vld [vmem:[%s2 + $0x38] sm:$0xff]
    %v300 = vld [vmem:[%s2 + $0x40] sm:$0xff]
    %v301 = vld [vmem:[%s2 + $0x48] sm:$0xff]
    %v302 = vld [vmem:[%s2 + $0x50] sm:$0xff]
    %v303 = vld [vmem:[%s2 + $0x58] sm:$0xff]
    %v304 = vld [vmem:[%s2 + $0x60] sm:$0xff]
    %v305 = vld [vmem:[%s2 + $0x68] sm:$0xff]
    %v306 = vld [vmem:[%s2 + $0x70] sm:$0xff]
    %v307 = vld [vmem:[%s2 + $0x78] sm:$0xff]
    %v308 = vld [vmem:[%s3] sm:$0x1]
    %310 = vset.pattern.permute.xlu0 0
    %311 = vperm.xlu0 %310, %v292
    %v312 = vpop.permute.xlu0 %311
    %315 = vset.pattern.permute.xlu0 0
    %316 = vperm.xlu0 %315, %v293
    %v317 = vpop.permute.xlu0 %316
    %320 = vset.pattern.permute.xlu0 0
    %321 = vperm.xlu0 %320, %v294
    %v322 = vpop.permute.xlu0 %321
    %325 = vset.pattern.permute.xlu0 0
    %326 = vperm.xlu0 %325, %v295
    %v327 = vpop.permute.xlu0 %326
    %330 = vset.pattern.permute.xlu0 0
    %331 = vperm.xlu0 %330, %v296
    %v332 = vpop.permute.xlu0 %331
    %335 = vset.pattern.permute.xlu0 0
    %336 = vperm.xlu0 %335, %v297
    %v337 = vpop.permute.xlu0 %336
    %340 = vset.pattern.permute.xlu0 0
    %341 = vperm.xlu0 %340, %v298
    %v342 = vpop.permute.xlu0 %341
    %345 = vset.pattern.permute.xlu0 0
    %346 = vperm.xlu0 %345, %v299
    %v347 = vpop.permute.xlu0 %346
    %350 = vset.pattern.permute.xlu0 0
    %351 = vperm.xlu0 %350, %v300
    %v352 = vpop.permute.xlu0 %351
    %355 = vset.pattern.permute.xlu0 0
    %356 = vperm.xlu0 %355, %v301
    %v357 = vpop.permute.xlu0 %356
    %360 = vset.pattern.permute.xlu0 0
    %361 = vperm.xlu0 %360, %v302
    %v362 = vpop.permute.xlu0 %361
    %365 = vset.pattern.permute.xlu0 0
    %366 = vperm.xlu0 %365, %v303
    %v367 = vpop.permute.xlu0 %366
    %370 = vset.pattern.permute.xlu0 0
    %371 = vperm.xlu0 %370, %v304
    %v372 = vpop.permute.xlu0 %371
    %375 = vset.pattern.permute.xlu0 0
    %376 = vperm.xlu0 %375, %v305
    %v377 = vpop.permute.xlu0 %376
    %380 = vset.pattern.permute.xlu0 0
    %381 = vperm.xlu0 %380, %v306
    %v382 = vpop.permute.xlu0 %381
    %385 = vset.pattern.permute.xlu0 0
    %386 = vperm.xlu0 %385, %v307
    %v387 = vpop.permute.xlu0 %386
    %v390 = vlaneseq
    %v391 = vshrl.u32 %v390, 7
    %v392 = vsub.s32 0, %v391
    %v393 = vrot.slane %v308, %v392
    %v395 = vadd.f32 %v312, %v393
    %v396 = vadd.f32 %v317, %v393
    %v397 = vadd.f32 %v322, %v393
    %v398 = vadd.f32 %v327, %v393
    %v399 = vadd.f32 %v332, %v393
    %v400 = vadd.f32 %v337, %v393
    %v401 = vadd.f32 %v342, %v393
    %v402 = vadd.f32 %v347, %v393
    %v403 = vadd.f32 %v352, %v393
    %v404 = vadd.f32 %v357, %v393
    %v405 = vadd.f32 %v362, %v393
    %v406 = vadd.f32 %v367, %v393
    %v407 = vadd.f32 %v372, %v393
    %v408 = vadd.f32 %v377, %v393
    %v409 = vadd.f32 %v382, %v393
    %v410 = vadd.f32 %v387, %v393
    %v411 = vmul.f32 %v214, 2.0
    %v412 = vmul.f32 %v219, 2.0
    %v413 = vmul.f32 %v224, 2.0
    %v414 = vmul.f32 %v229, 2.0
    %v415 = vmul.f32 %v234, 2.0
    %v416 = vmul.f32 %v239, 2.0
    %v417 = vmul.f32 %v244, 2.0
    %v418 = vmul.f32 %v249, 2.0
    %v419 = vmul.f32 %v254, 2.0
    %v420 = vmul.f32 %v259, 2.0
    %v421 = vmul.f32 %v264, 2.0
    %v422 = vmul.f32 %v269, 2.0
    %v423 = vmul.f32 %v274, 2.0
    %v424 = vmul.f32 %v279, 2.0
    %v425 = vmul.f32 %v284, 2.0
    %v426 = vmul.f32 %v289, 2.0
    %v427 = vsub.f32 %v395, %v411
    %v428 = vsub.f32 %v396, %v412
    %v429 = vsub.f32 %v397, %v413
    %v430 = vsub.f32 %v398, %v414
    %v431 = vsub.f32 %v399, %v415
    %v432 = vsub.f32 %v400, %v416
    %v433 = vsub.f32 %v401, %v417
    %v434 = vsub.f32 %v402, %v418
    %v435 = vsub.f32 %v403, %v419
    %v436 = vsub.f32 %v404, %v420
    %v437 = vsub.f32 %v405, %v421
    %v438 = vsub.f32 %v406, %v422
    %v439 = vsub.f32 %v407, %v423
    %v440 = vsub.f32 %v408, %v424
    %v441 = vsub.f32 %v409, %v425
    %v442 = vsub.f32 %v410, %v426
    %v443 = vmax.f32 %v427, 0.0
    %v444 = vmax.f32 %v428, 0.0
    %v445 = vmax.f32 %v429, 0.0
    %v446 = vmax.f32 %v430, 0.0
    %v447 = vmax.f32 %v431, 0.0
    %v448 = vmax.f32 %v432, 0.0
    %v449 = vmax.f32 %v433, 0.0
    %v450 = vmax.f32 %v434, 0.0
    %v451 = vmax.f32 %v435, 0.0
    %v452 = vmax.f32 %v436, 0.0
    %v453 = vmax.f32 %v437, 0.0
    %v454 = vmax.f32 %v438, 0.0
    %v455 = vmax.f32 %v439, 0.0
    %v456 = vmax.f32 %v440, 0.0
    %v457 = vmax.f32 %v441, 0.0
    %v458 = vmax.f32 %v442, 0.0
    %v459 = vrsqrt.pop %v443
    %v460 = vmul.f32 %v443, %v459
    %vm461 = vcmp.eq.f32.partialorder %v443, inf
    %v462 = vsel %vm461, %v443, %v460
    %vm463 = vcmp.eq.f32.partialorder %v443, 0.0
    %v464 = vand.u32 %v443, 2147483648
    %v465 = vsel %vm463, %v464, %v462
    %v466 = vrsqrt.pop %v444
    %v467 = vmul.f32 %v444, %v466
    %vm468 = vcmp.eq.f32.partialorder %v444, inf
    %v469 = vsel %vm468, %v444, %v467
    %vm470 = vcmp.eq.f32.partialorder %v444, 0.0
    %v471 = vand.u32 %v444, 2147483648
    %v472 = vsel %vm470, %v471, %v469
    %v473 = vrsqrt.pop %v445
    %v474 = vmul.f32 %v445, %v473
    %vm475 = vcmp.eq.f32.partialorder %v445, inf
    %v476 = vsel %vm475, %v445, %v474
    %vm477 = vcmp.eq.f32.partialorder %v445, 0.0
    %v478 = vand.u32 %v445, 2147483648
    %v479 = vsel %vm477, %v478, %v476
    %v480 = vrsqrt.pop %v446
    %v481 = vmul.f32 %v446, %v480
    %vm482 = vcmp.eq.f32.partialorder %v446, inf
    %v483 = vsel %vm482, %v446, %v481
    %vm484 = vcmp.eq.f32.partialorder %v446, 0.0
    %v485 = vand.u32 %v446, 2147483648
    %v486 = vsel %vm484, %v485, %v483
    %v487 = vrsqrt.pop %v447
    %v488 = vmul.f32 %v447, %v487
    %vm489 = vcmp.eq.f32.partialorder %v447, inf
    %v490 = vsel %vm489, %v447, %v488
    %vm491 = vcmp.eq.f32.partialorder %v447, 0.0
    %v492 = vand.u32 %v447, 2147483648
    %v493 = vsel %vm491, %v492, %v490
    %v494 = vrsqrt.pop %v448
    %v495 = vmul.f32 %v448, %v494
    %vm496 = vcmp.eq.f32.partialorder %v448, inf
    %v497 = vsel %vm496, %v448, %v495
    %vm498 = vcmp.eq.f32.partialorder %v448, 0.0
    %v499 = vand.u32 %v448, 2147483648
    %v500 = vsel %vm498, %v499, %v497
    %v501 = vrsqrt.pop %v449
    %v502 = vmul.f32 %v449, %v501
    %vm503 = vcmp.eq.f32.partialorder %v449, inf
    %v504 = vsel %vm503, %v449, %v502
    %vm505 = vcmp.eq.f32.partialorder %v449, 0.0
    %v506 = vand.u32 %v449, 2147483648
    %v507 = vsel %vm505, %v506, %v504
    %v508 = vrsqrt.pop %v450
    %v509 = vmul.f32 %v450, %v508
    %vm510 = vcmp.eq.f32.partialorder %v450, inf
    %v511 = vsel %vm510, %v450, %v509
    %vm512 = vcmp.eq.f32.partialorder %v450, 0.0
    %v513 = vand.u32 %v450, 2147483648
    %v514 = vsel %vm512, %v513, %v511
    %v515 = vrsqrt.pop %v451
    %v516 = vmul.f32 %v451, %v515
    %vm517 = vcmp.eq.f32.partialorder %v451, inf
    %v518 = vsel %vm517, %v451, %v516
    %vm519 = vcmp.eq.f32.partialorder %v451, 0.0
    %v520 = vand.u32 %v451, 2147483648
    %v521 = vsel %vm519, %v520, %v518
    %v522 = vrsqrt.pop %v452
    %v523 = vmul.f32 %v452, %v522
    %vm524 = vcmp.eq.f32.partialorder %v452, inf
    %v525 = vsel %vm524, %v452, %v523
    %vm526 = vcmp.eq.f32.partialorder %v452, 0.0
    %v527 = vand.u32 %v452, 2147483648
    %v528 = vsel %vm526, %v527, %v525
    %v529 = vrsqrt.pop %v453
    %v530 = vmul.f32 %v453, %v529
    %vm531 = vcmp.eq.f32.partialorder %v453, inf
    %v532 = vsel %vm531, %v453, %v530
    %vm533 = vcmp.eq.f32.partialorder %v453, 0.0
    %v534 = vand.u32 %v453, 2147483648
    %v535 = vsel %vm533, %v534, %v532
    %v536 = vrsqrt.pop %v454
    %v537 = vmul.f32 %v454, %v536
    %vm538 = vcmp.eq.f32.partialorder %v454, inf
    %v539 = vsel %vm538, %v454, %v537
    %vm540 = vcmp.eq.f32.partialorder %v454, 0.0
    %v541 = vand.u32 %v454, 2147483648
    %v542 = vsel %vm540, %v541, %v539
    %v543 = vrsqrt.pop %v455
    %v544 = vmul.f32 %v455, %v543
    %vm545 = vcmp.eq.f32.partialorder %v455, inf
    %v546 = vsel %vm545, %v455, %v544
    %vm547 = vcmp.eq.f32.partialorder %v455, 0.0
    %v548 = vand.u32 %v455, 2147483648
    %v549 = vsel %vm547, %v548, %v546
    %v550 = vrsqrt.pop %v456
    %v551 = vmul.f32 %v456, %v550
    %vm552 = vcmp.eq.f32.partialorder %v456, inf
    %v553 = vsel %vm552, %v456, %v551
    %vm554 = vcmp.eq.f32.partialorder %v456, 0.0
    %v555 = vand.u32 %v456, 2147483648
    %v556 = vsel %vm554, %v555, %v553
    %v557 = vrsqrt.pop %v457
    %v558 = vmul.f32 %v457, %v557
    %vm559 = vcmp.eq.f32.partialorder %v457, inf
    %v560 = vsel %vm559, %v457, %v558
    %vm561 = vcmp.eq.f32.partialorder %v457, 0.0
    %v562 = vand.u32 %v457, 2147483648
    %v563 = vsel %vm561, %v562, %v560
    %v564 = vrsqrt.pop %v458
    %v565 = vmul.f32 %v458, %v564
    %vm566 = vcmp.eq.f32.partialorder %v458, inf
    %v567 = vsel %vm566, %v458, %v565
    %vm568 = vcmp.eq.f32.partialorder %v458, 0.0
    %v569 = vand.u32 %v458, 2147483648
    %v570 = vsel %vm568, %v569, %v567
    %s571 = smul.u32 0, 128
    %v572 = vlaneseq
    %v573 = vshrl.u32 %v572, 7
    %v574 = vadd.s32 %v573, 8
    %v575 = vadd.s32 %v573, 16
    %v576 = vadd.s32 %v573, 24
    %v577 = vadd.s32 %v573, 32
    %v578 = vadd.s32 %v573, 40
    %v579 = vadd.s32 %v573, 48
    %v580 = vadd.s32 %v573, 56
    %v581 = vadd.s32 %v573, 64
    %v582 = vadd.s32 %v573, 72
    %v583 = vadd.s32 %v573, 80
    %v584 = vadd.s32 %v573, 88
    %v585 = vadd.s32 %v573, 96
    %v586 = vadd.s32 %v573, 104
    %v587 = vadd.s32 %v573, 112
    %v588 = vadd.s32 %v573, 120
    %v589 = vstv %s571
    %v590 = vadd.s32 %v589, %v573
    %v591 = vadd.s32 %v589, %v574
    %v592 = vadd.s32 %v589, %v575
    %v593 = vadd.s32 %v589, %v576
    %v594 = vadd.s32 %v589, %v577
    %v595 = vadd.s32 %v589, %v578
    %v596 = vadd.s32 %v589, %v579
    %v597 = vadd.s32 %v589, %v580
    %v598 = vadd.s32 %v589, %v581
    %v599 = vadd.s32 %v589, %v582
    %v600 = vadd.s32 %v589, %v583
    %v601 = vadd.s32 %v589, %v584
    %v602 = vadd.s32 %v589, %v585
    %v603 = vadd.s32 %v589, %v586
    %v604 = vadd.s32 %v589, %v587
    %v605 = vadd.s32 %v589, %v588
    %s606 = smul.u32 0, 128
    %v607 = vlaneseq
    %v608 = vand.u32 %v607, 127
    %v609 = vstv %s606
    %v610 = vadd.s32 %v609, %v608
    %vm611 = vcmp.eq.s32.totalorder %v590, %v610
    %vm612 = vcmp.eq.s32.totalorder %v591, %v610
    %vm613 = vcmp.eq.s32.totalorder %v592, %v610
    %vm614 = vcmp.eq.s32.totalorder %v593, %v610
    %vm615 = vcmp.eq.s32.totalorder %v594, %v610
    %vm616 = vcmp.eq.s32.totalorder %v595, %v610
    %vm617 = vcmp.eq.s32.totalorder %v596, %v610
    %vm618 = vcmp.eq.s32.totalorder %v597, %v610
    %vm619 = vcmp.eq.s32.totalorder %v598, %v610
    %vm620 = vcmp.eq.s32.totalorder %v599, %v610
    %vm621 = vcmp.eq.s32.totalorder %v600, %v610
    %vm622 = vcmp.eq.s32.totalorder %v601, %v610
    %vm623 = vcmp.eq.s32.totalorder %v602, %v610
    %vm624 = vcmp.eq.s32.totalorder %v603, %v610
    %vm625 = vcmp.eq.s32.totalorder %v604, %v610
    %vm626 = vcmp.eq.s32.totalorder %v605, %v610
    %v627 = vsel %vm611, 0.0, %v465
    %v628 = vsel %vm612, 0.0, %v472
    %v629 = vsel %vm613, 0.0, %v479
    %v630 = vsel %vm614, 0.0, %v486
    %v631 = vsel %vm615, 0.0, %v493
    %v632 = vsel %vm616, 0.0, %v500
    %v633 = vsel %vm617, 0.0, %v507
    %v634 = vsel %vm618, 0.0, %v514
    %v635 = vsel %vm619, 0.0, %v521
    %v636 = vsel %vm620, 0.0, %v528
    %v637 = vsel %vm621, 0.0, %v535
    %v638 = vsel %vm622, 0.0, %v542
    %v639 = vsel %vm623, 0.0, %v549
    %v640 = vsel %vm624, 0.0, %v556
    %v641 = vsel %vm625, 0.0, %v563
    %v642 = vsel %vm626, 0.0, %v570
    %643 = vst [vmem:[#allocation2] sm:$0xff] %v627
    %644 = vst [vmem:[#allocation2 + $0x8] sm:$0xff] %v628
    %645 = vst [vmem:[#allocation2 + $0x10] sm:$0xff] %v629
    %646 = vst [vmem:[#allocation2 + $0x18] sm:$0xff] %v630
    %647 = vst [vmem:[#allocation2 + $0x20] sm:$0xff] %v631
    %648 = vst [vmem:[#allocation2 + $0x28] sm:$0xff] %v632
    %649 = vst [vmem:[#allocation2 + $0x30] sm:$0xff] %v633
    %650 = vst [vmem:[#allocation2 + $0x38] sm:$0xff] %v634
    %651 = vst [vmem:[#allocation2 + $0x40] sm:$0xff] %v635
    %652 = vst [vmem:[#allocation2 + $0x48] sm:$0xff] %v636
    %653 = vst [vmem:[#allocation2 + $0x50] sm:$0xff] %v637
    %654 = vst [vmem:[#allocation2 + $0x58] sm:$0xff] %v638
    %655 = vst [vmem:[#allocation2 + $0x60] sm:$0xff] %v639
    %656 = vst [vmem:[#allocation2 + $0x68] sm:$0xff] %v640
    %657 = vst [vmem:[#allocation2 + $0x70] sm:$0xff] %v641
    %658 = vst [vmem:[#allocation2 + $0x78] sm:$0xff] %v642
    // Predicated region
    $region18: #{tpu_custom_call.1} parent=1 // pred_check
      _
    $region19: #{tpu_custom_call.1} parent=1 // pred_check_branch
      %660 = sbr.rel (0) target = $region21
    $region20: #{tpu_custom_call.1} parent=1 // pred_region
      %s662 = ssub.s32 2048, 2048
      %663 = vsyncadd [#allocation3], %s662
      %s664 = sshll.u32 [#allocation2], 4
      %s665 = int_to_ptr.vmem [resolvable:$true] %s664
      %670 = dma.vmem_to_hbm [thread:$0]  %s665, 2048, %s4, [#allocation3], 128, 128, 8
    $region21: #{tpu_custom_call.1} parent=1 // pred_fallthru
      _
    // Predicated region
    $region22: #{tpu_custom_call.1} parent=1 // pred_check
      _
    $region23: #{tpu_custom_call.1} parent=1 // pred_check_branch
      %672 = sbr.rel (0) target = $region25
    $region24: #{tpu_custom_call.1} parent=1 // pred_region
      %673 = dma.done [#allocation3], 2048
    $region25: #{tpu_custom_call.1} parent=1 // pred_fallthru
      _
    %674 = vsyncpa [#allocation3], 1

</llo_original>
